<compile_context>
chip_gen: v5e
topology: v5e:2x2
jax: 0.10.0
libtpu: 0.0.40
codegen_flags: <defaults>
</compile_context>

<pallas_src>
import functools

import jax
import jax.numpy as jnp
from jax.experimental import pallas as pl
from jax.experimental.pallas import tpu as pltpu

_SUB = 16  # batch-tile sublane granularity (covers f32 (8) and bf16/f16 (16))


def _round_up(x, m):
    return ((x + m - 1) // m) * m


def _cdiv(a, b):
    return (a + b - 1) // b


def _critic_kernel(obs_ref, act_ref, w1_ref, b1_ref, w2_ref, b2_ref,
                   wo_ref, bo_ref, out_ref, xin_ref, *, d_obs, merged):
    """Fused MLP critic for one batch tile.

    obs : (TB, D_obs)        act : (TB, D_act)
    w1  : (D_obs+D_act, H)   b1  : (1, H)       (w1/w2 in the MXU dtype, bf16)
    w2  : (H, H)             b2  : (1, H)
    wo  : (1, H) f32         bo  : (1, 1) f32
    out : (TB, 1)            xin : (TB, D_obs+D_act) f32 VMEM scratch
    """
    mxu_dtype = w1_ref.dtype

    if merged:
        # ---- Layer 1 (merged): in-VMEM concat + a single K=d_in MXU dot. ---
        # obs/act are written at static lane offsets into the persistent
        # scratch; the lane placement rides the vst/XLU slots which have slack
        # while it removes one full K-padded MXU pass per 8 rows.
        xin_ref[:, :d_obs] = obs_ref[...].astype(jnp.float32)
        xin_ref[:, d_obs:] = act_ref[...].astype(jnp.float32)
        h1 = jnp.dot(xin_ref[...].astype(mxu_dtype), w1_ref[...],
                     preferred_element_type=jnp.float32)
    else:
        # ---- Layer 1 (fallback): split-weight dots, always lowers. ---------
        h1 = (jnp.dot(obs_ref[...].astype(mxu_dtype), w1_ref[:d_obs, :],
                      preferred_element_type=jnp.float32)
              + jnp.dot(act_ref[...].astype(mxu_dtype), w1_ref[d_obs:, :],
                        preferred_element_type=jnp.float32))

    h1 = jnp.maximum(h1 + b1_ref[...], 0.0)      # bias/ReLU in f32 (v5e VPU)

    # ---- Layer 2 -----------------------------------------------------------
    h2 = jnp.dot(h1.astype(mxu_dtype), w2_ref[...],
                 preferred_element_type=jnp.float32) + b2_ref[...]
    h2 = jnp.maximum(h2, 0.0)

    # ---- Output head (H -> 1): VPU multiply + XLU lane reduction -----------
    # (avoids an N=1 MXU matmul; the (TB,1) masked store is off the MXU-bound
    #  critical path, see header note on the lane-dense-output review item).
    v = jnp.sum(h2 * wo_ref[...], axis=-1, keepdims=True) + bo_ref[...]
    out_ref[...] = v.astype(out_ref.dtype)


def prepare_params(params, *, mxu_dtype=jnp.bfloat16):
    """One-time weight prep hoisted out of the per-call forward path."""
    if "_prepared" in params:
        return params
    w1 = jnp.asarray(params["w1"])
    hidden = w1.shape[1]
    return {
        "w1": w1.astype(mxu_dtype),                                        # (d_in, H)
        "b1": jnp.asarray(params["b1"]).reshape(1, hidden).astype(jnp.float32),
        "w2": jnp.asarray(params["w2"]).astype(mxu_dtype),                 # (H, H)
        "b2": jnp.asarray(params["b2"]).reshape(1, hidden).astype(jnp.float32),
        "w_out": jnp.asarray(params["w_out"]).reshape(1, hidden).astype(jnp.float32),
        "b_out": jnp.asarray(params["b_out"]).reshape(1, 1).astype(jnp.float32),
        "_prepared": True,
    }


def critic_forward(observations, actions, params, *, block_b=4096,
                   mxu_dtype=jnp.bfloat16):
    """JAX wrapper: batch tiling + one fused, batch-tiled Pallas kernel."""
    p = prepare_params(params, mxu_dtype=mxu_dtype)

    # encoder is None in this configuration -> obs_enc = observations.
    obs = jnp.asarray(observations)
    act = jnp.asarray(actions)
    if not jnp.issubdtype(obs.dtype, jnp.floating):
        obs = obs.astype(jnp.float32)
    if not jnp.issubdtype(act.dtype, jnp.floating):
        act = act.astype(jnp.float32)
    assert obs.ndim == 2 and act.ndim == 2

    B, d_obs = obs.shape
    d_act = act.shape[-1]
    d_in = d_obs + d_act
    hidden = p["w1"].shape[1]
    assert p["w1"].shape[0] == d_in

    # ---- Batch tiling -------------------------------------------------------
    b_rows = _round_up(max(B, 1), _SUB)
    tb = min(_round_up(block_b, _SUB), b_rows)
    if tb == b_rows and b_rows > 1024:
        # >= 2 grid steps so both v7x TensorCores get work on the parallel axis.
        tb = _round_up(_cdiv(b_rows, 2), _SUB)

    if tb >= B:
        # Single tile exactly covering a (<16-row) padded batch.
        if b_rows != B:
            obs = jnp.pad(obs, ((0, b_rows - B), (0, 0)))
            act = jnp.pad(act, ((0, b_rows - B), (0, 0)))
        tb = b_rows
        out_rows = b_rows
        grid_n = 1
    else:
        # Multi-tile: Pallas handles the partial last block (reads are padded,
        # out-of-range writes discarded), so no full-batch jnp.pad in HBM.
        out_rows = B
        grid_n = _cdiv(B, tb)

    w1, b1, w2, b2, wo, bo = (p["w1"], p["b1"], p["w2"], p["b2"],
                              p["w_out"], p["b_out"])

    # ---- VMEM budget (kept well under v7x's 64 MiB physical VMEM) ----------
    param_bytes = sum(int(a.size) * a.dtype.itemsize
                      for a in (w1, b1, w2, b2, wo, bo))
    est = (2 * tb * d_obs * obs.dtype.itemsize     # obs tiles (double-buffered)
           + 2 * tb * d_act * act.dtype.itemsize   # act tiles (double-buffered)
           + 2 * tb * 4                            # out tiles (f32)
           + 2 * param_bytes                       # resident weights (2 buffers)
           + tb * d_in * 4                         # xin scratch (f32)
           + tb * hidden * 2 * (4 + 2)             # h1/h2 f32 + bf16 copies
           + tb * hidden * 4)                      # head temporaries
    vmem_limit = int(min(max(2 * est, 16 * 1024 * 1024), 48 * 1024 * 1024))

    def tile(shape):
        return pl.BlockSpec(shape, lambda i: (i, 0))

    def resident(shape):
        return pl.BlockSpec(shape, lambda i: (0, 0))

    def call(merged):
        return pl.pallas_call(
            functools.partial(_critic_kernel, d_obs=d_obs, merged=merged),
            out_shape=jax.ShapeDtypeStruct((out_rows, 1), jnp.float32),
            grid=(grid_n,),
            in_specs=[
                tile((tb, d_obs)),           # obs tile (streams per grid step)
                tile((tb, d_act)),           # act tile
                resident((d_in, hidden)),    # w1 (VMEM-resident)
                resident((1, hidden)),       # b1
                resident((hidden, hidden)),  # w2
                resident((1, hidden)),       # b2
                resident((1, hidden)),       # w_out row
                resident((1, 1)),            # b_out
            ],
            out_specs=tile((tb, 1)),
            scratch_shapes=[pltpu.VMEM((tb, d_in), jnp.float32)],
            compiler_params=pltpu.CompilerParams(
                dimension_semantics=("parallel",),   # megacore on v7x
                vmem_limit_bytes=vmem_limit,
            ),
        )(obs, act, w1, b1, w2, b2, wo, bo)

    try:
        value = call(merged=True)       # merged layer-1: 2 MXU passes / 8 rows
    except Exception:                   # e.g. Mosaic lowering limitation
        value = call(merged=False)      # split layer-1: 3 MXU passes / 8 rows

    return value[:B, 0]  # (B,)


def init_params(key, obs_dim, act_dim, hidden, init_final=None):
    """Deterministic synthetic init matching the module's parameter shapes.

    network.net = [Linear(D_in,H), ReLU, Linear(H,H), ReLU] (activate_final=False
    -> output head reads network.net[-2].out_features == H).  Weights are
    stored as (in, out), already transposed vs. torch.nn.Linear.
    """
    d_in = obs_dim + act_dim
    k1, k2, k3, k4, k5, k6 = jax.random.split(key, 6)
    scale1 = 1.0 / jnp.sqrt(d_in)
    scale2 = 1.0 / jnp.sqrt(hidden)
    params = {
        "w1": jax.random.uniform(k1, (d_in, hidden), jnp.float32, -scale1, scale1),
        "b1": jax.random.uniform(k2, (1, hidden), jnp.float32, -scale1, scale1),
        "w2": jax.random.uniform(k3, (hidden, hidden), jnp.float32, -scale2, scale2),
        "b2": jax.random.uniform(k4, (1, hidden), jnp.float32, -scale2, scale2),
    }
    if init_final is not None:
        params["w_out"] = jax.random.uniform(
            k5, (hidden, 1), jnp.float32, -init_final, init_final)
        params["b_out"] = jax.random.uniform(
            k6, (1, 1), jnp.float32, -init_final, init_final)
    else:
        params["w_out"] = jax.random.uniform(
            k5, (hidden, 1), jnp.float32, -scale2, scale2)
        params["b_out"] = jax.random.uniform(
            k6, (1, 1), jnp.float32, -scale2, scale2)
    return params


def reference_forward(observations, actions, params, *, mxu_dtype=jnp.float32):
    """Pure-JAX reference (raw params). mxu_dtype=bf16 mirrors the kernel."""
    x = jnp.concatenate([observations.astype(jnp.float32),
                         actions.astype(jnp.float32)], axis=-1)
    w1 = params["w1"].astype(mxu_dtype)
    w2 = params["w2"].astype(mxu_dtype)
    h1 = jnp.maximum(
        jnp.dot(x.astype(mxu_dtype), w1, preferred_element_type=jnp.float32)
        + params["b1"].reshape(1, -1), 0.0)
    h2 = jnp.maximum(
        jnp.dot(h1.astype(mxu_dtype), w2, preferred_element_type=jnp.float32)
        + params["b2"].reshape(1, -1), 0.0)
    v = jnp.sum(h2 * params["w_out"].reshape(1, -1), axis=-1)
    return v + params["b_out"].reshape(())


if __name__ == "__main__":
    key = jax.random.PRNGKey(0)
    k_obs, k_act, k_params, k_obs2, k_act2 = jax.random.split(key, 5)

    # Small demo shapes; HIDDEN=128 keeps the matmuls lane-dense on the MXU.
    # (On v6e/v7x a production hidden size >=256 would fill the 256-wide MXU.)
    B, OBS_DIM, ACT_DIM, HIDDEN = 8, 16, 8, 128
    observations = jax.random.normal(k_obs, (B, OBS_DIM), jnp.float32)
    actions = jax.random.normal(k_act, (B, ACT_DIM), jnp.float32)

    params = init_params(k_params, OBS_DIM, ACT_DIM, HIDDEN, init_final=None)
    prepped = prepare_params(params)   # weight prep hoisted out of the call path

    q = jax.block_until_ready(critic_forward(observations, actions, prepped))
    assert q.shape == (B,), q.shape

    q_ref_bf16 = reference_forward(observations, actions, params,
                                   mxu_dtype=jnp.bfloat16)
    q_ref_f32 = reference_forward(observations, actions, params,
                                  mxu_dtype=jnp.float32)
    # Tight check against a reference mirroring the kernel's bf16 MXU path.
    assert jnp.allclose(q, q_ref_bf16, atol=1e-3, rtol=1e-3), (q, q_ref_bf16)
    # Loose check against the pure-f32 reference (bf16 cast error only).
    assert jnp.allclose(q, q_ref_f32, atol=5e-2, rtol=5e-2), (q, q_ref_f32)

    # Second case: bf16 inputs passed straight through, batch > 1024 that is
    # not a tile multiple -> exercises the multi-tile, partial-last-block,
    # no-jnp.pad path and the >=2-step grid for v7x.
    B2 = 1037
    obs2 = jax.random.normal(k_obs2, (B2, OBS_DIM), jnp.float32).astype(jnp.bfloat16)
    act2 = jax.random.normal(k_act2, (B2, ACT_DIM), jnp.float32).astype(jnp.bfloat16)
    q2 = jax.block_until_ready(critic_forward(obs2, act2, prepped))
    q2_ref = reference_forward(obs2, act2, params, mxu_dtype=jnp.bfloat16)
    assert q2.shape == (B2,), q2.shape
    assert jnp.allclose(q2, q2_ref, atol=2e-3, rtol=2e-3), float(
        jnp.max(jnp.abs(q2 - q2_ref)))

    # TODO(synk): the optional `encoder` (e.g. a conv image encoder) is None in
    # this configuration; only the MLP critic path is implemented in-kernel.
    print("KERNEL_OK")
</pallas_src>

<mosaic_0001>
module attributes {stable_mosaic.version = 11 : i64} {
  func.func @_critic_kernel(%arg0: i32, %arg1: memref<16x16xf32, #tpu.memory_space<vmem>>, %arg2: memref<16x8xf32, #tpu.memory_space<vmem>>, %arg3: memref<24x128xbf16, #tpu.memory_space<vmem>>, %arg4: memref<1x128xf32, #tpu.memory_space<vmem>>, %arg5: memref<128x128xbf16, #tpu.memory_space<vmem>>, %arg6: memref<1x128xf32, #tpu.memory_space<vmem>>, %arg7: memref<1x128xf32, #tpu.memory_space<vmem>>, %arg8: memref<1x1xf32, #tpu.memory_space<vmem>>, %arg9: memref<16x1xf32, #tpu.memory_space<vmem>>, %arg10: memref<16x24xf32, #tpu.memory_space<vmem>>) attributes {dimension_semantics = [#tpu.dimension_semantics<parallel>], iteration_bounds = array<i64: 1>, scalar_prefetch = 0 : i64, scratch_operands = 1 : i64, tpu.core_type = #tpu.core_type<tc>, window_params = [{transform_indices = @transform_0, window_bounds = array<i64: 16, 16>}, {transform_indices = @transform_1, window_bounds = array<i64: 16, 8>}, {pipeline_mode = #tpu.pipeline_mode<synchronous>, transform_indices = @transform_2, window_bounds = array<i64: 24, 128>}, {pipeline_mode = #tpu.pipeline_mode<synchronous>, transform_indices = @transform_3, window_bounds = array<i64: 1, 128>}, {pipeline_mode = #tpu.pipeline_mode<synchronous>, transform_indices = @transform_4, window_bounds = array<i64: 128, 128>}, {pipeline_mode = #tpu.pipeline_mode<synchronous>, transform_indices = @transform_5, window_bounds = array<i64: 1, 128>}, {pipeline_mode = #tpu.pipeline_mode<synchronous>, transform_indices = @transform_6, window_bounds = array<i64: 1, 128>}, {pipeline_mode = #tpu.pipeline_mode<synchronous>, transform_indices = @transform_7, window_bounds = array<i64: 1, 1>}, {transform_indices = @transform_8, window_bounds = array<i64: 16, 1>}]} {
    %c0 = arith.constant 0 : index
    %c0_0 = arith.constant 0 : index
    %0 = vector.load %arg1[%c0, %c0_0] : memref<16x16xf32, #tpu.memory_space<vmem>>, vector<16x16xf32>
    %c0_1 = arith.constant 0 : index
    %c0_2 = arith.constant 0 : index
    %1 = vector.load %arg10[%c0_1, %c0_2] : memref<16x24xf32, #tpu.memory_space<vmem>>, vector<16x16xf32>
    tpu.vector_store %arg10[%c0_1, %c0_2], %0 {strides = array<i32>} : memref<16x24xf32, #tpu.memory_space<vmem>>, vector<16x16xf32>,
    %c0_3 = arith.constant 0 : index
    %c0_4 = arith.constant 0 : index
    %2 = vector.load %arg2[%c0_3, %c0_4] : memref<16x8xf32, #tpu.memory_space<vmem>>, vector<16x8xf32>
    %c0_5 = arith.constant 0 : index
    %c16 = arith.constant 16 : index
    %3 = vector.load %arg10[%c0_5, %c16] : memref<16x24xf32, #tpu.memory_space<vmem>>, vector<16x8xf32>
    tpu.vector_store %arg10[%c0_5, %c16], %2 {strides = array<i32>} : memref<16x24xf32, #tpu.memory_space<vmem>>, vector<16x8xf32>,
    %c0_6 = arith.constant 0 : index
    %c0_7 = arith.constant 0 : index
    %4 = vector.load %arg10[%c0_6, %c0_7] : memref<16x24xf32, #tpu.memory_space<vmem>>, vector<16x24xf32>
    %5 = arith.truncf %4 : vector<16x24xf32> to vector<16x24xbf16>
    %c0_8 = arith.constant 0 : index
    %c0_9 = arith.constant 0 : index
    %6 = vector.load %arg3[%c0_8, %c0_9] : memref<24x128xbf16, #tpu.memory_space<vmem>>, vector<24x128xbf16>
    %cst = arith.constant dense<0.000000e+00> : vector<16x128xf32>
    %7 = tpu.matmul %5, %6, %cst {dimension_numbers = #tpu.dot_dimension_numbers<[1], [0], [0], [1], [0, 0, 1, 1], [], []>} : vector<16x24xbf16>, vector<24x128xbf16>, vector<16x128xf32> -> vector<16x128xf32>
    %c0_10 = arith.constant 0 : index
    %c0_11 = arith.constant 0 : index
    %8 = vector.load %arg4[%c0_10, %c0_11] : memref<1x128xf32, #tpu.memory_space<vmem>>, vector<1x128xf32>
    %9 = vector.broadcast %8 : vector<1x128xf32> to vector<16x128xf32>
    %10 = arith.addf %7, %9 : vector<16x128xf32>
    %cst_12 = arith.constant 0.000000e+00 : f32
    %11 = vector.broadcast %cst_12 : f32 to vector<16x128xf32>
    %12 = arith.maximumf %10, %11 : vector<16x128xf32>
    %13 = arith.truncf %12 : vector<16x128xf32> to vector<16x128xbf16>
    %c0_13 = arith.constant 0 : index
    %c0_14 = arith.constant 0 : index
    %14 = vector.load %arg5[%c0_13, %c0_14] : memref<128x128xbf16, #tpu.memory_space<vmem>>, vector<128x128xbf16>
    %cst_15 = arith.constant dense<0.000000e+00> : vector<16x128xf32>
    %15 = tpu.matmul %13, %14, %cst_15 {dimension_numbers = #tpu.dot_dimension_numbers<[1], [0], [0], [1], [0, 0, 1, 1], [], []>} : vector<16x128xbf16>, vector<128x128xbf16>, vector<16x128xf32> -> vector<16x128xf32>
    %c0_16 = arith.constant 0 : index
    %c0_17 = arith.constant 0 : index
    %16 = vector.load %arg6[%c0_16, %c0_17] : memref<1x128xf32, #tpu.memory_space<vmem>>, vector<1x128xf32>
    %17 = vector.broadcast %16 : vector<1x128xf32> to vector<16x128xf32>
    %18 = arith.addf %15, %17 : vector<16x128xf32>
    %cst_18 = arith.constant 0.000000e+00 : f32
    %19 = vector.broadcast %cst_18 : f32 to vector<16x128xf32>
    %20 = arith.maximumf %18, %19 : vector<16x128xf32>
    %c0_19 = arith.constant 0 : index
    %c0_20 = arith.constant 0 : index
    %21 = vector.load %arg7[%c0_19, %c0_20] : memref<1x128xf32, #tpu.memory_space<vmem>>, vector<1x128xf32>
    %22 = vector.broadcast %21 : vector<1x128xf32> to vector<16x128xf32>
    %23 = arith.mulf %20, %22 : vector<16x128xf32>
    %cst_21 = arith.constant dense<0.000000e+00> : vector<16xf32>
    %24 = vector.multi_reduction <add>, %23, %cst_21 [1] : vector<16x128xf32> to vector<16xf32>
    %25 = vector.shape_cast %24 : vector<16xf32> to vector<16x1xf32>
    %c0_22 = arith.constant 0 : index
    %c0_23 = arith.constant 0 : index
    %26 = vector.load %arg8[%c0_22, %c0_23] : memref<1x1xf32, #tpu.memory_space<vmem>>, vector<1x1xf32>
    %27 = vector.broadcast %26 : vector<1x1xf32> to vector<16x1xf32>
    %28 = arith.addf %25, %27 : vector<16x1xf32>
    %c0_24 = arith.constant 0 : index
    %c0_25 = arith.constant 0 : index
    %29 = vector.load %arg9[%c0_24, %c0_25] : memref<16x1xf32, #tpu.memory_space<vmem>>, vector<16x1xf32>
    tpu.vector_store %arg9[%c0_24, %c0_25], %28 {strides = array<i32>} : memref<16x1xf32, #tpu.memory_space<vmem>>, vector<16x1xf32>,
    return
  }
  func.func @transform_0(%arg0: i32) -> (i32, i32) {
    %c0_i32 = arith.constant 0 : i32
    %c0_i32_0 = arith.constant 0 : i32
    return %arg0, %c0_i32 : i32, i32
  }
  func.func @transform_1(%arg0: i32) -> (i32, i32) {
    %c0_i32 = arith.constant 0 : i32
    %c0_i32_0 = arith.constant 0 : i32
    return %arg0, %c0_i32 : i32, i32
  }
  func.func @transform_2(%arg0: i32) -> (i32, i32) {
    %c0_i32 = arith.constant 0 : i32
    %c0_i32_0 = arith.constant 0 : i32
    %c0_i32_1 = arith.constant 0 : i32
    return %c0_i32, %c0_i32_0 : i32, i32
  }
  func.func @transform_3(%arg0: i32) -> (i32, i32) {
    %c0_i32 = arith.constant 0 : i32
    %c0_i32_0 = arith.constant 0 : i32
    %c0_i32_1 = arith.constant 0 : i32
    return %c0_i32, %c0_i32_0 : i32, i32
  }
  func.func @transform_4(%arg0: i32) -> (i32, i32) {
    %c0_i32 = arith.constant 0 : i32
    %c0_i32_0 = arith.constant 0 : i32
    %c0_i32_1 = arith.constant 0 : i32
    return %c0_i32, %c0_i32_0 : i32, i32
  }
  func.func @transform_5(%arg0: i32) -> (i32, i32) {
    %c0_i32 = arith.constant 0 : i32
    %c0_i32_0 = arith.constant 0 : i32
    %c0_i32_1 = arith.constant 0 : i32
    return %c0_i32, %c0_i32_0 : i32, i32
  }
  func.func @transform_6(%arg0: i32) -> (i32, i32) {
    %c0_i32 = arith.constant 0 : i32
    %c0_i32_0 = arith.constant 0 : i32
    %c0_i32_1 = arith.constant 0 : i32
    return %c0_i32, %c0_i32_0 : i32, i32
  }
  func.func @transform_7(%arg0: i32) -> (i32, i32) {
    %c0_i32 = arith.constant 0 : i32
    %c0_i32_0 = arith.constant 0 : i32
    %c0_i32_1 = arith.constant 0 : i32
    return %c0_i32, %c0_i32_0 : i32, i32
  }
  func.func @transform_8(%arg0: i32) -> (i32, i32) {
    %c0_i32 = arith.constant 0 : i32
    %c0_i32_0 = arith.constant 0 : i32
    return %arg0, %c0_i32 : i32, i32
  }
}

module attributes {stable_mosaic.version = 11 : i64} {
  func.func @_critic_kernel(%arg0: i32, %arg1: memref<16x16xf32, #tpu.memory_space<vmem>>, %arg2: memref<16x8xf32, #tpu.memory_space<vmem>>, %arg3: memref<24x128xbf16, #tpu.memory_space<vmem>>, %arg4: memref<1x128xf32, #tpu.memory_space<vmem>>, %arg5: memref<128x128xbf16, #tpu.memory_space<vmem>>, %arg6: memref<1x128xf32, #tpu.memory_space<vmem>>, %arg7: memref<1x128xf32, #tpu.memory_space<vmem>>, %arg8: memref<1x1xf32, #tpu.memory_space<vmem>>, %arg9: memref<16x1xf32, #tpu.memory_space<vmem>>, %arg10: memref<16x24xf32, #tpu.memory_space<vmem>>) attributes {dimension_semantics = [#tpu.dimension_semantics<parallel>], iteration_bounds = array<i64: 1>, scalar_prefetch = 0 : i64, scratch_operands = 1 : i64, tpu.core_type = #tpu.core_type<tc>, window_params = [{transform_indices = @transform_0, window_bounds = array<i64: 16, 16>}, {transform_indices = @transform_1, window_bounds = array<i64: 16, 8>}, {pipeline_mode = #tpu.pipeline_mode<synchronous>, transform_indices = @transform_2, window_bounds = array<i64: 24, 128>}, {pipeline_mode = #tpu.pipeline_mode<synchronous>, transform_indices = @transform_3, window_bounds = array<i64: 1, 128>}, {pipeline_mode = #tpu.pipeline_mode<synchronous>, transform_indices = @transform_4, window_bounds = array<i64: 128, 128>}, {pipeline_mode = #tpu.pipeline_mode<synchronous>, transform_indices = @transform_5, window_bounds = array<i64: 1, 128>}, {pipeline_mode = #tpu.pipeline_mode<synchronous>, transform_indices = @transform_6, window_bounds = array<i64: 1, 128>}, {pipeline_mode = #tpu.pipeline_mode<synchronous>, transform_indices = @transform_7, window_bounds = array<i64: 1, 1>}, {transform_indices = @transform_8, window_bounds = array<i64: 16, 1>}]} {
    %c0 = arith.constant 0 : index
    %c0_0 = arith.constant 0 : index
    %0 = vector.load %arg1[%c0, %c0_0] : memref<16x16xf32, #tpu.memory_space<vmem>>, vector<16x16xf32>
    %1 = arith.truncf %0 : vector<16x16xf32> to vector<16x16xbf16>
    %c0_1 = arith.constant 0 : index
    %c0_2 = arith.constant 0 : index
    %2 = vector.load %arg3[%c0_1, %c0_2] : memref<24x128xbf16, #tpu.memory_space<vmem>>, vector<16x128xbf16>
    %cst = arith.constant dense<0.000000e+00> : vector<16x128xf32>
    %3 = tpu.matmul %1, %2, %cst {dimension_numbers = #tpu.dot_dimension_numbers<[1], [0], [0], [1], [0, 0, 1, 1], [], []>} : vector<16x16xbf16>, vector<16x128xbf16>, vector<16x128xf32> -> vector<16x128xf32>
    %c0_3 = arith.constant 0 : index
    %c0_4 = arith.constant 0 : index
    %4 = vector.load %arg2[%c0_3, %c0_4] : memref<16x8xf32, #tpu.memory_space<vmem>>, vector<16x8xf32>
    %5 = arith.truncf %4 : vector<16x8xf32> to vector<16x8xbf16>
    %c16 = arith.constant 16 : index
    %c0_5 = arith.constant 0 : index
    %6 = vector.load %arg3[%c16, %c0_5] : memref<24x128xbf16, #tpu.memory_space<vmem>>, vector<8x128xbf16>
    %cst_6 = arith.constant dense<0.000000e+00> : vector<16x128xf32>
    %7 = tpu.matmul %5, %6, %cst_6 {dimension_numbers = #tpu.dot_dimension_numbers<[1], [0], [0], [1], [0, 0, 1, 1], [], []>} : vector<16x8xbf16>, vector<8x128xbf16>, vector<16x128xf32> -> vector<16x128xf32>
    %8 = arith.addf %3, %7 : vector<16x128xf32>
    %c0_7 = arith.constant 0 : index
    %c0_8 = arith.constant 0 : index
    %9 = vector.load %arg4[%c0_7, %c0_8] : memref<1x128xf32, #tpu.memory_space<vmem>>, vector<1x128xf32>
    %10 = vector.broadcast %9 : vector<1x128xf32> to vector<16x128xf32>
    %11 = arith.addf %8, %10 : vector<16x128xf32>
    %cst_9 = arith.constant 0.000000e+00 : f32
    %12 = vector.broadcast %cst_9 : f32 to vector<16x128xf32>
    %13 = arith.maximumf %11, %12 : vector<16x128xf32>
    %14 = arith.truncf %13 : vector<16x128xf32> to vector<16x128xbf16>
    %c0_10 = arith.constant 0 : index
    %c0_11 = arith.constant 0 : index
    %15 = vector.load %arg5[%c0_10, %c0_11] : memref<128x128xbf16, #tpu.memory_space<vmem>>, vector<128x128xbf16>
    %cst_12 = arith.constant dense<0.000000e+00> : vector<16x128xf32>
    %16 = tpu.matmul %14, %15, %cst_12 {dimension_numbers = #tpu.dot_dimension_numbers<[1], [0], [0], [1], [0, 0, 1, 1], [], []>} : vector<16x128xbf16>, vector<128x128xbf16>, vector<16x128xf32> -> vector<16x128xf32>
    %c0_13 = arith.constant 0 : index
    %c0_14 = arith.constant 0 : index
    %17 = vector.load %arg6[%c0_13, %c0_14] : memref<1x128xf32, #tpu.memory_space<vmem>>, vector<1x128xf32>
    %18 = vector.broadcast %17 : vector<1x128xf32> to vector<16x128xf32>
    %19 = arith.addf %16, %18 : vector<16x128xf32>
    %cst_15 = arith.constant 0.000000e+00 : f32
    %20 = vector.broadcast %cst_15 : f32 to vector<16x128xf32>
    %21 = arith.maximumf %19, %20 : vector<16x128xf32>
    %c0_16 = arith.constant 0 : index
    %c0_17 = arith.constant 0 : index
    %22 = vector.load %arg7[%c0_16, %c0_17] : memref<1x128xf32, #tpu.memory_space<vmem>>, vector<1x128xf32>
    %23 = vector.broadcast %22 : vector<1x128xf32> to vector<16x128xf32>
    %24 = arith.mulf %21, %23 : vector<16x128xf32>
    %cst_18 = arith.constant dense<0.000000e+00> : vector<16xf32>
    %25 = vector.multi_reduction <add>, %24, %cst_18 [1] : vector<16x128xf32> to vector<16xf32>
    %26 = vector.shape_cast %25 : vector<16xf32> to vector<16x1xf32>
    %c0_19 = arith.constant 0 : index
    %c0_20 = arith.constant 0 : index
    %27 = vector.load %arg8[%c0_19, %c0_20] : memref<1x1xf32, #tpu.memory_space<vmem>>, vector<1x1xf32>
    %28 = vector.broadcast %27 : vector<1x1xf32> to vector<16x1xf32>
    %29 = arith.addf %26, %28 : vector<16x1xf32>
    %c0_21 = arith.constant 0 : index
    %c0_22 = arith.constant 0 : index
    %30 = vector.load %arg9[%c0_21, %c0_22] : memref<16x1xf32, #tpu.memory_space<vmem>>, vector<16x1xf32>
    tpu.vector_store %arg9[%c0_21, %c0_22], %29 {strides = array<i32>} : memref<16x1xf32, #tpu.memory_space<vmem>>, vector<16x1xf32>,
    return
  }
  func.func @transform_0(%arg0: i32) -> (i32, i32) {
    %c0_i32 = arith.constant 0 : i32
    %c0_i32_0 = arith.constant 0 : i32
    return %arg0, %c0_i32 : i32, i32
  }
  func.func @transform_1(%arg0: i32) -> (i32, i32) {
    %c0_i32 = arith.constant 0 : i32
    %c0_i32_0 = arith.constant 0 : i32
    return %arg0, %c0_i32 : i32, i32
  }
  func.func @transform_2(%arg0: i32) -> (i32, i32) {
    %c0_i32 = arith.constant 0 : i32
    %c0_i32_0 = arith.constant 0 : i32
    %c0_i32_1 = arith.constant 0 : i32
    return %c0_i32, %c0_i32_0 : i32, i32
  }
  func.func @transform_3(%arg0: i32) -> (i32, i32) {
    %c0_i32 = arith.constant 0 : i32
    %c0_i32_0 = arith.constant 0 : i32
    %c0_i32_1 = arith.constant 0 : i32
    return %c0_i32, %c0_i32_0 : i32, i32
  }
  func.func @transform_4(%arg0: i32) -> (i32, i32) {
    %c0_i32 = arith.constant 0 : i32
    %c0_i32_0 = arith.constant 0 : i32
    %c0_i32_1 = arith.constant 0 : i32
    return %c0_i32, %c0_i32_0 : i32, i32
  }
  func.func @transform_5(%arg0: i32) -> (i32, i32) {
    %c0_i32 = arith.constant 0 : i32
    %c0_i32_0 = arith.constant 0 : i32
    %c0_i32_1 = arith.constant 0 : i32
    return %c0_i32, %c0_i32_0 : i32, i32
  }
  func.func @transform_6(%arg0: i32) -> (i32, i32) {
    %c0_i32 = arith.constant 0 : i32
    %c0_i32_0 = arith.constant 0 : i32
    %c0_i32_1 = arith.constant 0 : i32
    return %c0_i32, %c0_i32_0 : i32, i32
  }
  func.func @transform_7(%arg0: i32) -> (i32, i32) {
    %c0_i32 = arith.constant 0 : i32
    %c0_i32_0 = arith.constant 0 : i32
    %c0_i32_1 = arith.constant 0 : i32
    return %c0_i32, %c0_i32_0 : i32, i32
  }
  func.func @transform_8(%arg0: i32) -> (i32, i32) {
    %c0_i32 = arith.constant 0 : i32
    %c0_i32_0 = arith.constant 0 : i32
    return %arg0, %c0_i32 : i32, i32
  }
}

</mosaic_0001>

<llo_original>
// kernel: tpu_custom_call.1
$region0: #{tpu_custom_call.1}
  #allocation0 [shape = 'u32[]', space=smem, size = 0x4, offset = 0x4, fixed_abs, tag = 'smem constant byte address 0x4 - core index']
  #allocation1 [shape = 'u32[72,128]{1,0:T(1,128)}', space=vmem, size = 0x9000, scoped, tag = 'internal scratch']
  #allocation2 [shape = 'f32[16,24]{1,0:T(8,128)}', space=vmem, size = 0x2000, scoped, tag = 'scratch operand']
  #allocation3 [shape = 'f32[1,1]{1,0:T(1,128)S(1)}', space=vmem, size = 0x200, scoped, tag = 'scoped memory for tpu_custom_call.1']
  %s0 = inlined_call_operand.vmem [shape: f32[16,16], index: 0, kind: input, shape index: {}]
  %s1 = inlined_call_operand.vmem [shape: f32[16,8], index: 1, kind: input, shape index: {}]
  %s2 = inlined_call_operand.hbm [shape: bf16[24,128], index: 2, kind: input, shape index: {}]
  %s3 = inlined_call_operand.vmem [shape: f32[1,128], index: 3, kind: input, shape index: {}]
  %s4 = inlined_call_operand.hbm [shape: bf16[128,128], index: 4, kind: input, shape index: {}]
  %s5 = inlined_call_operand.vmem [shape: f32[1,128], index: 5, kind: input, shape index: {}]
  %s6 = inlined_call_operand.vmem [shape: f32[1,128], index: 6, kind: input, shape index: {}]
  %s7 = inlined_call_operand.<no memory space> [shape: f32[1,1], index: 7, kind: input, shape index: {}]
  %s8 = inlined_call_operand.vmem [shape: f32[16,1], index: 8, kind: output, shape index: {}]
  %s9 = sld [smem:[#allocation0]]
  $region50: #{tpu_custom_call.1} parent=0
    _
  %s11 = ssub.s32 1, %s9
  %s12 = scalar_select 0, %s11, %s9
  %v13 = vstv %s7
  %14 = vst [vmem:[#allocation3] sm:$0x1] %v13
  $region1: #{tpu_custom_call.1} parent=0
    #allocation4 [shape = 'u8[6144]{0}', space=vmem, size = 0x1800, scoped, tag = 'input window, operand 2, single buffered']
    #allocation5 [shape = 's32[1]{0}', space=sflag, size = 0x4, scoped, tag = 'scoped memory for tpu_custom_call.1']
    #allocation6 [shape = 'u8[32768]{0}', space=vmem, size = 0x8000, scoped, tag = 'input window, operand 4, single buffered']
    #allocation7 [shape = 's32[1]{0}', space=sflag, size = 0x4, scoped, tag = 'scoped memory for tpu_custom_call.1']
    %15 = vsyncpa [#allocation5], 0
    %16 = vsyncpa [#allocation7], 0
    // Predicated region
    $region2: #{tpu_custom_call.1} parent=1 // pred_check
      _
    $region3: #{tpu_custom_call.1} parent=1 // pred_check_branch
      %18 = sbr.rel (0) target = $region5
    $region4: #{tpu_custom_call.1} parent=1 // pred_region
      _
    $region5: #{tpu_custom_call.1} parent=1 // pred_fallthru
      _
    // Predicated region
    $region6: #{tpu_custom_call.1} parent=1 // pred_check
      _
    $region7: #{tpu_custom_call.1} parent=1 // pred_check_branch
      %20 = sbr.rel (0) target = $region9
    $region8: #{tpu_custom_call.1} parent=1 // pred_region
      _
    $region9: #{tpu_custom_call.1} parent=1 // pred_fallthru
      _
    // Predicated region
    $region10: #{tpu_custom_call.1} parent=1 // pred_check
      _
    $region11: #{tpu_custom_call.1} parent=1 // pred_check_branch
      %22 = sbr.rel (0) target = $region13
    $region12: #{tpu_custom_call.1} parent=1 // pred_region
      %24 = vsyncadd [#allocation5], 0
      %s25 = sshll.u32 %s2, 4
      %s26 = int_to_ptr.hbm [resolvable:$true] %s25
      %s27 = sshll.u32 [#allocation4], 4
      %s28 = int_to_ptr.vmem [resolvable:$true] %s27
      %33 = dma.hbm_to_vmem [thread:$0]  %s26, 192, %s28, [#allocation5], 64, 64, 4
    $region13: #{tpu_custom_call.1} parent=1 // pred_fallthru
      _
    // Predicated region
    $region14: #{tpu_custom_call.1} parent=1 // pred_check
      _
    $region15: #{tpu_custom_call.1} parent=1 // pred_check_branch
      %35 = sbr.rel (0) target = $region17
    $region16: #{tpu_custom_call.1} parent=1 // pred_region
      _
    $region17: #{tpu_custom_call.1} parent=1 // pred_fallthru
      _
    // Predicated region
    $region18: #{tpu_custom_call.1} parent=1 // pred_check
      _
    $region19: #{tpu_custom_call.1} parent=1 // pred_check_branch
      %37 = sbr.rel (0) target = $region21
    $region20: #{tpu_custom_call.1} parent=1 // pred_region
      %39 = vsyncadd [#allocation7], 0
      %s40 = sshll.u32 %s4, 4
      %s41 = int_to_ptr.hbm [resolvable:$true] %s40
      %s42 = sshll.u32 [#allocation6], 4
      %s43 = int_to_ptr.vmem [resolvable:$true] %s42
      %48 = dma.hbm_to_vmem [thread:$0]  %s41, 1024, %s43, [#allocation7], 64, 64, 4
    $region21: #{tpu_custom_call.1} parent=1 // pred_fallthru
      _
    // Predicated region
    $region22: #{tpu_custom_call.1} parent=1 // pred_check
      _
    $region23: #{tpu_custom_call.1} parent=1 // pred_check_branch
      %50 = sbr.rel (0) target = $region25
    $region24: #{tpu_custom_call.1} parent=1 // pred_region
      _
    $region25: #{tpu_custom_call.1} parent=1 // pred_fallthru
      _
    // Predicated region
    $region26: #{tpu_custom_call.1} parent=1 // pred_check
      _
    $region27: #{tpu_custom_call.1} parent=1 // pred_check_branch
      %52 = sbr.rel (0) target = $region29
    $region28: #{tpu_custom_call.1} parent=1 // pred_region
      _
    $region29: #{tpu_custom_call.1} parent=1 // pred_fallthru
      _
    // Predicated region
    $region30: #{tpu_custom_call.1} parent=1 // pred_check
      _
    $region31: #{tpu_custom_call.1} parent=1 // pred_check_branch
      %54 = sbr.rel (0) target = $region33
    $region32: #{tpu_custom_call.1} parent=1 // pred_region
      _
    $region33: #{tpu_custom_call.1} parent=1 // pred_fallthru
      _
    // Predicated region
    $region34: #{tpu_custom_call.1} parent=1 // pred_check
      _
    $region35: #{tpu_custom_call.1} parent=1 // pred_check_branch
      %56 = sbr.rel (0) target = $region37
    $region36: #{tpu_custom_call.1} parent=1 // pred_region
      %58 = dma.done [#allocation5], 192
    $region37: #{tpu_custom_call.1} parent=1 // pred_fallthru
      _
    // Predicated region
    $region38: #{tpu_custom_call.1} parent=1 // pred_check
      _
    $region39: #{tpu_custom_call.1} parent=1 // pred_check_branch
      %60 = sbr.rel (0) target = $region41
    $region40: #{tpu_custom_call.1} parent=1 // pred_region
      %62 = dma.done [#allocation7], 1024
    $region41: #{tpu_custom_call.1} parent=1 // pred_fallthru
      _
    %v64 = vld [vmem:[%s0] sm:$0xff]
    %v65 = vld [vmem:[%s0 + $0x8] sm:$0xff]
    %vm66 = vcmask 130048
    %67 = vst.msk [vmem:[#allocation2] sm:$0xff] %vm66, %v64
    %68 = vst.msk [vmem:[#allocation2 + $0x8] sm:$0xff] %vm66, %v65
    %v69 = vld [vmem:[%s1] sm:$0xff]
    %v70 = vld [vmem:[%s1 + $0x8] sm:$0xff]
    %73 = vrot.lane.b32.xlu0 %v69, 16
    %v74 = vpop.permute.xlu0 %73
    %75 = vrot.lane.b32.xlu0 %v70, 16
    %v76 = vpop.permute.xlu0 %75
    %vm79 = vcmask 195712
    %80 = vst.msk [vmem:[#allocation2] sm:$0xff] %vm79, %v74
    %81 = vst.msk [vmem:[#allocation2 + $0x8] sm:$0xff] %vm79, %v76
    %v82 = vld [vmem:[#allocation2] sm:$0xff]
    %v83 = vld [vmem:[#allocation2 + $0x8] sm:$0xff]
    %v84 = vpack.c.bf16 %v83, %v82
    %v85 = vld [vmem:[#allocation4] sm:$0xf]
    %v86 = vld [vmem:[#allocation4 + $0x4] sm:$0xf]
    %v87 = vld [vmem:[#allocation4 + $0x8] sm:$0xf]
    %v88 = vld [vmem:[%s3] sm:$0x1]
    %v90 = vperm.slane %v88, 0
    %v95 = vunpack.c.l.b16 %v85
    %v96 = vunpack.c.l.b16 %v86
    %v97 = vunpack.c.l.b16 %v87
    %v98 = vpack.c.b16 %v96, %v95
    %v99 = vpack.c.b16 %v97, %v97
    %vm101 = vcmask 195584
    %v103 = vsel %vm101, %v84, 0
    %vm105 = vcmask 1043456
    %v107 = vsel %vm105, %v99, 0
    %109 = vmatpush.bf16.msra.mxu0 0
    %110 = vmatpush.bf16.msra.mxu0 0
    %111 = vmatpush.bf16.msra.mxu0 0
    %112 = vmatpush.bf16.msra.mxu0 0
    %113 = vmatpush.bf16.msra.mxu0 0
    %114 = vmatpush.bf16.msra.mxu0 0
    %115 = vmatpush.bf16.msra.mxu0 %v107
    %116 = vmatpush.bf16.msra.mxu0 %v98
    %117 = vmatmul.bf16.gmra.mxu0 %v103
    %v118 = vpop.f32.mrf.mxu0
    %v119 = vadd.f32 %v90, %v118
    %v120 = vpop.f32.mrf.mxu0
    %v121 = vadd.f32 %v90, %v120
    %122 = vdwg.mxu0
    %v123 = vmax.f32 %v119, 0.0
    %v124 = vmax.f32 %v121, 0.0
    %v125 = vpack.c.bf16 %v124, %v123
    %v126 = vld [vmem:[#allocation6] sm:$0xf]
    %v127 = vld [vmem:[#allocation6 + $0x4] sm:$0xf]
    %v128 = vld [vmem:[#allocation6 + $0x8] sm:$0xf]
    %v129 = vld [vmem:[#allocation6 + $0xc] sm:$0xf]
    %v130 = vld [vmem:[#allocation6 + $0x10] sm:$0xf]
    %v131 = vld [vmem:[#allocation6 + $0x14] sm:$0xf]
    %v132 = vld [vmem:[#allocation6 + $0x18] sm:$0xf]
    %v133 = vld [vmem:[#allocation6 + $0x1c] sm:$0xf]
    %v134 = vld [vmem:[#allocation6 + $0x20] sm:$0xf]
    %v135 = vld [vmem:[#allocation6 + $0x24] sm:$0xf]
    %v136 = vld [vmem:[#allocation6 + $0x28] sm:$0xf]
    %v137 = vld [vmem:[#allocation6 + $0x2c] sm:$0xf]
    %v138 = vld [vmem:[#allocation6 + $0x30] sm:$0xf]
    %v139 = vld [vmem:[#allocation6 + $0x34] sm:$0xf]
    %v140 = vld [vmem:[#allocation6 + $0x38] sm:$0xf]
    %v141 = vld [vmem:[#allocation6 + $0x3c] sm:$0xf]
    %v142 = vld [vmem:[%s5] sm:$0x1]
    %v144 = vperm.slane %v142, 0
    %v162 = vunpack.c.l.b16 %v126
    %v163 = vunpack.c.l.b16 %v127
    %v164 = vunpack.c.l.b16 %v128
    %v165 = vunpack.c.l.b16 %v129
    %v166 = vunpack.c.l.b16 %v130
    %v167 = vunpack.c.l.b16 %v131
    %v168 = vunpack.c.l.b16 %v132
    %v169 = vunpack.c.l.b16 %v133
    %v170 = vunpack.c.l.b16 %v134
    %v171 = vunpack.c.l.b16 %v135
    %v172 = vunpack.c.l.b16 %v136
    %v173 = vunpack.c.l.b16 %v137
    %v174 = vunpack.c.l.b16 %v138
    %v175 = vunpack.c.l.b16 %v139
    %v176 = vunpack.c.l.b16 %v140
    %v177 = vunpack.c.l.b16 %v141
    %v178 = vpack.c.b16 %v163, %v162
    %v179 = vpack.c.b16 %v165, %v164
    %v180 = vpack.c.b16 %v167, %v166
    %v181 = vpack.c.b16 %v169, %v168
    %v182 = vpack.c.b16 %v171, %v170
    %v183 = vpack.c.b16 %v173, %v172
    %v184 = vpack.c.b16 %v175, %v174
    %v185 = vpack.c.b16 %v177, %v176
    %194 = vmatpush.bf16.msra.mxu0 %v185
    %195 = vmatpush.bf16.msra.mxu0 %v184
    %196 = vmatpush.bf16.msra.mxu0 %v183
    %197 = vmatpush.bf16.msra.mxu0 %v182
    %198 = vmatpush.bf16.msra.mxu0 %v181
    %199 = vmatpush.bf16.msra.mxu0 %v180
    %200 = vmatpush.bf16.msra.mxu0 %v179
    %201 = vmatpush.bf16.msra.mxu0 %v178
    %202 = vmatmul.bf16.gmra.mxu0 %v125
    %v203 = vpop.f32.mrf.mxu0
    %v204 = vadd.f32 %v144, %v203
    %v205 = vpop.f32.mrf.mxu0
    %v206 = vadd.f32 %v144, %v205
    %207 = vdwg.mxu0
    %v208 = vmax.f32 %v204, 0.0
    %v209 = vmax.f32 %v206, 0.0
    %v210 = vld [vmem:[%s6] sm:$0x1]
    %v212 = vperm.slane %v210, 0
    %v214 = vmul.f32 %v208, %v212
    %v215 = vmul.f32 %v209, %v212
    %216 = vadd.xlane.f32.xlu0 %v214
    %v217 = vpop.xlane.xlu0 %216
    %218 = vadd.xlane.f32.xlu0 %v215
    %v219 = vpop.xlane.xlu0 %218
    %v220 = vld [vmem:[#allocation3] sm:$0x1]
    %v222 = vperm.slane %v220, 0
    %v224 = vadd.f32 %v217, %v222
    %v225 = vadd.f32 %v219, %v222
    %vm226 = vcmask 7168
    %227 = vst.msk [vmem:[%s8] sm:$0xff] %vm226, %v224
    %228 = vst.msk [vmem:[%s8 + $0x8] sm:$0xff] %vm226, %v225
    // Predicated region
    $region42: #{tpu_custom_call.1} parent=1 // pred_check
      _
    $region43: #{tpu_custom_call.1} parent=1 // pred_check_branch
      %230 = sbr.rel (0) target = $region45
    $region44: #{tpu_custom_call.1} parent=1 // pred_region
      _
    $region45: #{tpu_custom_call.1} parent=1 // pred_fallthru
      _
    // Predicated region
    $region46: #{tpu_custom_call.1} parent=1 // pred_check
      _
    $region47: #{tpu_custom_call.1} parent=1 // pred_check_branch
      %232 = sbr.rel (0) target = $region49
    $region48: #{tpu_custom_call.1} parent=1 // pred_region
      _
    $region49: #{tpu_custom_call.1} parent=1 // pred_fallthru
      _
    %233 = vsyncpa [#allocation5], 1
    %234 = vsyncpa [#allocation7], 1

// kernel: tpu_custom_call.1
$region0: #{tpu_custom_call.1}
  #allocation0 [shape = 'u32[]', space=smem, size = 0x4, offset = 0x4, fixed_abs, tag = 'smem constant byte address 0x4 - core index']
  #allocation1 [shape = 'u32[72,128]{1,0:T(1,128)}', space=vmem, size = 0x9000, scoped, tag = 'internal scratch']
  #allocation2 [shape = 'f32[16,24]{1,0:T(8,128)}', space=vmem, size = 0x2000, scoped, tag = 'scratch operand']
  #allocation3 [shape = 'f32[1,1]{1,0:T(1,128)S(1)}', space=vmem, size = 0x200, scoped, tag = 'scoped memory for tpu_custom_call.1']
  %s0 = inlined_call_operand.vmem [shape: f32[16,16], index: 0, kind: input, shape index: {}]
  %s1 = inlined_call_operand.vmem [shape: f32[16,8], index: 1, kind: input, shape index: {}]
  %s2 = inlined_call_operand.hbm [shape: bf16[24,128], index: 2, kind: input, shape index: {}]
  %s3 = inlined_call_operand.vmem [shape: f32[1,128], index: 3, kind: input, shape index: {}]
  %s4 = inlined_call_operand.hbm [shape: bf16[128,128], index: 4, kind: input, shape index: {}]
  %s5 = inlined_call_operand.vmem [shape: f32[1,128], index: 5, kind: input, shape index: {}]
  %s6 = inlined_call_operand.vmem [shape: f32[1,128], index: 6, kind: input, shape index: {}]
  %s7 = inlined_call_operand.<no memory space> [shape: f32[1,1], index: 7, kind: input, shape index: {}]
  %s8 = inlined_call_operand.vmem [shape: f32[16,1], index: 8, kind: output, shape index: {}]
  %s9 = sld [smem:[#allocation0]]
  $region50: #{tpu_custom_call.1} parent=0
    _
  %s11 = ssub.s32 1, %s9
  %s12 = scalar_select 0, %s11, %s9
  %v13 = vstv %s7
  %14 = vst [vmem:[#allocation3] sm:$0x1] %v13
  $region1: #{tpu_custom_call.1} parent=0
    #allocation4 [shape = 'u8[6144]{0}', space=vmem, size = 0x1800, scoped, tag = 'input window, operand 2, single buffered']
    #allocation5 [shape = 's32[1]{0}', space=sflag, size = 0x4, scoped, tag = 'scoped memory for tpu_custom_call.1']
    #allocation6 [shape = 'u8[32768]{0}', space=vmem, size = 0x8000, scoped, tag = 'input window, operand 4, single buffered']
    #allocation7 [shape = 's32[1]{0}', space=sflag, size = 0x4, scoped, tag = 'scoped memory for tpu_custom_call.1']
    %15 = vsyncpa [#allocation5], 0
    %16 = vsyncpa [#allocation7], 0
    // Predicated region
    $region2: #{tpu_custom_call.1} parent=1 // pred_check
      _
    $region3: #{tpu_custom_call.1} parent=1 // pred_check_branch
      %18 = sbr.rel (0) target = $region5
    $region4: #{tpu_custom_call.1} parent=1 // pred_region
      _
    $region5: #{tpu_custom_call.1} parent=1 // pred_fallthru
      _
    // Predicated region
    $region6: #{tpu_custom_call.1} parent=1 // pred_check
      _
    $region7: #{tpu_custom_call.1} parent=1 // pred_check_branch
      %20 = sbr.rel (0) target = $region9
    $region8: #{tpu_custom_call.1} parent=1 // pred_region
      _
    $region9: #{tpu_custom_call.1} parent=1 // pred_fallthru
      _
    // Predicated region
    $region10: #{tpu_custom_call.1} parent=1 // pred_check
      _
    $region11: #{tpu_custom_call.1} parent=1 // pred_check_branch
      %22 = sbr.rel (0) target = $region13
    $region12: #{tpu_custom_call.1} parent=1 // pred_region
      %24 = vsyncadd [#allocation5], 0
      %s25 = sshll.u32 %s2, 4
      %s26 = int_to_ptr.hbm [resolvable:$true] %s25
      %s27 = sshll.u32 [#allocation4], 4
      %s28 = int_to_ptr.vmem [resolvable:$true] %s27
      %33 = dma.hbm_to_vmem [thread:$0]  %s26, 192, %s28, [#allocation5], 64, 64, 4
    $region13: #{tpu_custom_call.1} parent=1 // pred_fallthru
      _
    // Predicated region
    $region14: #{tpu_custom_call.1} parent=1 // pred_check
      _
    $region15: #{tpu_custom_call.1} parent=1 // pred_check_branch
      %35 = sbr.rel (0) target = $region17
    $region16: #{tpu_custom_call.1} parent=1 // pred_region
      _
    $region17: #{tpu_custom_call.1} parent=1 // pred_fallthru
      _
    // Predicated region
    $region18: #{tpu_custom_call.1} parent=1 // pred_check
      _
    $region19: #{tpu_custom_call.1} parent=1 // pred_check_branch
      %37 = sbr.rel (0) target = $region21
    $region20: #{tpu_custom_call.1} parent=1 // pred_region
      %39 = vsyncadd [#allocation7], 0
      %s40 = sshll.u32 %s4, 4
      %s41 = int_to_ptr.hbm [resolvable:$true] %s40
      %s42 = sshll.u32 [#allocation6], 4
      %s43 = int_to_ptr.vmem [resolvable:$true] %s42
      %48 = dma.hbm_to_vmem [thread:$0]  %s41, 1024, %s43, [#allocation7], 64, 64, 4
    $region21: #{tpu_custom_call.1} parent=1 // pred_fallthru
      _
    // Predicated region
    $region22: #{tpu_custom_call.1} parent=1 // pred_check
      _
    $region23: #{tpu_custom_call.1} parent=1 // pred_check_branch
      %50 = sbr.rel (0) target = $region25
    $region24: #{tpu_custom_call.1} parent=1 // pred_region
      _
    $region25: #{tpu_custom_call.1} parent=1 // pred_fallthru
      _
    // Predicated region
    $region26: #{tpu_custom_call.1} parent=1 // pred_check
      _
    $region27: #{tpu_custom_call.1} parent=1 // pred_check_branch
      %52 = sbr.rel (0) target = $region29
    $region28: #{tpu_custom_call.1} parent=1 // pred_region
      _
    $region29: #{tpu_custom_call.1} parent=1 // pred_fallthru
      _
    // Predicated region
    $region30: #{tpu_custom_call.1} parent=1 // pred_check
      _
    $region31: #{tpu_custom_call.1} parent=1 // pred_check_branch
      %54 = sbr.rel (0) target = $region33
    $region32: #{tpu_custom_call.1} parent=1 // pred_region
      _
    $region33: #{tpu_custom_call.1} parent=1 // pred_fallthru
      _
    // Predicated region
    $region34: #{tpu_custom_call.1} parent=1 // pred_check
      _
    $region35: #{tpu_custom_call.1} parent=1 // pred_check_branch
      %56 = sbr.rel (0) target = $region37
    $region36: #{tpu_custom_call.1} parent=1 // pred_region
      %58 = dma.done [#allocation5], 192
    $region37: #{tpu_custom_call.1} parent=1 // pred_fallthru
      _
    // Predicated region
    $region38: #{tpu_custom_call.1} parent=1 // pred_check
      _
    $region39: #{tpu_custom_call.1} parent=1 // pred_check_branch
      %60 = sbr.rel (0) target = $region41
    $region40: #{tpu_custom_call.1} parent=1 // pred_region
      %62 = dma.done [#allocation7], 1024
    $region41: #{tpu_custom_call.1} parent=1 // pred_fallthru
      _
    %v64 = vld [vmem:[%s0] sm:$0xff]
    %v65 = vld [vmem:[%s0 + $0x8] sm:$0xff]
    %v66 = vpack.c.bf16 %v65, %v64
    %v67 = vld [vmem:[#allocation4] sm:$0xf]
    %v68 = vld [vmem:[#allocation4 + $0x4] sm:$0xf]
    %v69 = vld [vmem:[%s1] sm:$0xff]
    %v70 = vld [vmem:[%s1 + $0x8] sm:$0xff]
    %v71 = vpack.c.bf16 %v70, %v69
    %v72 = vld [vmem:[#allocation4 + $0x8] sm:$0xf]
    %vm73 = vcmask 64512
    %v75 = vsel %vm73, %v71, 0
    %vm77 = vcmask 1043456
    %v79 = vsel %vm77, %v72, 0
    %81 = vmatpush.bf16.msra.mxu0 0
    %82 = vmatpush.bf16.msra.mxu0 0
    %83 = vmatpush.bf16.msra.mxu0 0
    %84 = vmatpush.bf16.msra.mxu0 0
    %85 = vmatpush.bf16.msra.mxu0 0
    %86 = vmatpush.bf16.msra.mxu0 0
    %87 = vmatpush.bf16.msra.mxu0 0
    %88 = vmatpush.bf16.msra.mxu0 %v79
    %89 = vmatmul.bf16.gmra.mxu0 %v75
    %v90 = vpop.f32.mrf.mxu0
    %v91 = vadd.f32 0.0, %v90
    %v92 = vpop.f32.mrf.mxu0
    %v93 = vadd.f32 0.0, %v92
    %94 = vdwg.mxu0
    %v97 = vunpack.c.l.b16 %v67
    %v98 = vunpack.c.l.b16 %v68
    %v99 = vpack.c.b16 %v98, %v97
    %vm101 = vcmask 130048
    %v103 = vsel %vm101, %v66, 0
    %105 = vmatpush.bf16.msra.mxu0 0
    %106 = vmatpush.bf16.msra.mxu0 0
    %107 = vmatpush.bf16.msra.mxu0 0
    %108 = vmatpush.bf16.msra.mxu0 0
    %109 = vmatpush.bf16.msra.mxu0 0
    %110 = vmatpush.bf16.msra.mxu0 0
    %111 = vmatpush.bf16.msra.mxu0 0
    %112 = vmatpush.bf16.msra.mxu0 %v99
    %113 = vmatmul.bf16.gmra.mxu0 %v103
    %v114 = vpop.f32.mrf.mxu0
    %v115 = vadd.f32 %v91, %v114
    %v116 = vpop.f32.mrf.mxu0
    %v117 = vadd.f32 %v93, %v116
    %118 = vdwg.mxu0
    %v119 = vld [vmem:[%s3] sm:$0x1]
    %v121 = vperm.slane %v119, 0
    %v123 = vadd.f32 %v115, %v121
    %v124 = vadd.f32 %v117, %v121
    %v125 = vmax.f32 %v123, 0.0
    %v126 = vmax.f32 %v124, 0.0
    %v127 = vpack.c.bf16 %v126, %v125
    %v128 = vld [vmem:[#allocation6] sm:$0xf]
    %v129 = vld [vmem:[#allocation6 + $0x4] sm:$0xf]
    %v130 = vld [vmem:[#allocation6 + $0x8] sm:$0xf]
    %v131 = vld [vmem:[#allocation6 + $0xc] sm:$0xf]
    %v132 = vld [vmem:[#allocation6 + $0x10] sm:$0xf]
    %v133 = vld [vmem:[#allocation6 + $0x14] sm:$0xf]
    %v134 = vld [vmem:[#allocation6 + $0x18] sm:$0xf]
    %v135 = vld [vmem:[#allocation6 + $0x1c] sm:$0xf]
    %v136 = vld [vmem:[#allocation6 + $0x20] sm:$0xf]
    %v137 = vld [vmem:[#allocation6 + $0x24] sm:$0xf]
    %v138 = vld [vmem:[#allocation6 + $0x28] sm:$0xf]
    %v139 = vld [vmem:[#allocation6 + $0x2c] sm:$0xf]
    %v140 = vld [vmem:[#allocation6 + $0x30] sm:$0xf]
    %v141 = vld [vmem:[#allocation6 + $0x34] sm:$0xf]
    %v142 = vld [vmem:[#allocation6 + $0x38] sm:$0xf]
    %v143 = vld [vmem:[#allocation6 + $0x3c] sm:$0xf]
    %v144 = vld [vmem:[%s5] sm:$0x1]
    %v146 = vperm.slane %v144, 0
    %v164 = vunpack.c.l.b16 %v128
    %v165 = vunpack.c.l.b16 %v129
    %v166 = vunpack.c.l.b16 %v130
    %v167 = vunpack.c.l.b16 %v131
    %v168 = vunpack.c.l.b16 %v132
    %v169 = vunpack.c.l.b16 %v133
    %v170 = vunpack.c.l.b16 %v134
    %v171 = vunpack.c.l.b16 %v135
    %v172 = vunpack.c.l.b16 %v136
    %v173 = vunpack.c.l.b16 %v137
    %v174 = vunpack.c.l.b16 %v138
    %v175 = vunpack.c.l.b16 %v139
    %v176 = vunpack.c.l.b16 %v140
    %v177 = vunpack.c.l.b16 %v141
    %v178 = vunpack.c.l.b16 %v142
    %v179 = vunpack.c.l.b16 %v143
    %v180 = vpack.c.b16 %v165, %v164
    %v181 = vpack.c.b16 %v167, %v166
    %v182 = vpack.c.b16 %v169, %v168
    %v183 = vpack.c.b16 %v171, %v170
    %v184 = vpack.c.b16 %v173, %v172
    %v185 = vpack.c.b16 %v175, %v174
    %v186 = vpack.c.b16 %v177, %v176
    %v187 = vpack.c.b16 %v179, %v178
    %196 = vmatpush.bf16.msra.mxu0 %v187
    %197 = vmatpush.bf16.msra.mxu0 %v186
    %198 = vmatpush.bf16.msra.mxu0 %v185
    %199 = vmatpush.bf16.msra.mxu0 %v184
    %200 = vmatpush.bf16.msra.mxu0 %v183
    %201 = vmatpush.bf16.msra.mxu0 %v182
    %202 = vmatpush.bf16.msra.mxu0 %v181
    %203 = vmatpush.bf16.msra.mxu0 %v180
    %204 = vmatmul.bf16.gmra.mxu0 %v127
    %v205 = vpop.f32.mrf.mxu0
    %v206 = vadd.f32 %v146, %v205
    %v207 = vpop.f32.mrf.mxu0
    %v208 = vadd.f32 %v146, %v207
    %209 = vdwg.mxu0
    %v210 = vmax.f32 %v206, 0.0
    %v211 = vmax.f32 %v208, 0.0
    %v212 = vld [vmem:[%s6] sm:$0x1]
    %v214 = vperm.slane %v212, 0
    %v216 = vmul.f32 %v210, %v214
    %v217 = vmul.f32 %v211, %v214
    %218 = vadd.xlane.f32.xlu0 %v216
    %v219 = vpop.xlane.xlu0 %218
    %220 = vadd.xlane.f32.xlu0 %v217
    %v221 = vpop.xlane.xlu0 %220
    %v222 = vld [vmem:[#allocation3] sm:$0x1]
    %v224 = vperm.slane %v222, 0
    %v226 = vadd.f32 %v219, %v224
    %v227 = vadd.f32 %v221, %v224
    %vm228 = vcmask 7168
    %229 = vst.msk [vmem:[%s8] sm:$0xff] %vm228, %v226
    %230 = vst.msk [vmem:[%s8 + $0x8] sm:$0xff] %vm228, %v227
    // Predicated region
    $region42: #{tpu_custom_call.1} parent=1 // pred_check
      _
    $region43: #{tpu_custom_call.1} parent=1 // pred_check_branch
      %232 = sbr.rel (0) target = $region45
    $region44: #{tpu_custom_call.1} parent=1 // pred_region
      _
    $region45: #{tpu_custom_call.1} parent=1 // pred_fallthru
      _
    // Predicated region
    $region46: #{tpu_custom_call.1} parent=1 // pred_check
      _
    $region47: #{tpu_custom_call.1} parent=1 // pred_check_branch
      %234 = sbr.rel (0) target = $region49
    $region48: #{tpu_custom_call.1} parent=1 // pred_region
      _
    $region49: #{tpu_custom_call.1} parent=1 // pred_fallthru
      _
    %235 = vsyncpa [#allocation5], 1
    %236 = vsyncpa [#allocation7], 1

</llo_original>
